<compile_context>
chip_gen: v5e
topology: v5e:2x2
jax: 0.10.0
libtpu: 0.0.40
codegen_flags: <defaults>
</compile_context>

<pallas_src>
import functools

import jax
import jax.numpy as jnp
from jax.experimental import pallas as pl
from jax.experimental.pallas import tpu as pltpu


def _round_up(x, m):
    return ((x + m - 1) // m) * m


@functools.lru_cache(maxsize=1)
def _tpu_num_cores():
    """Best-effort TensorCores-per-chip detection (v7x = 2, v5e/v6e = 1)."""
    try:
        kind = jax.devices()[0].device_kind.lower()
    except Exception:
        return 1
    return 2 if "v7" in kind else 1


def _choose_tile(n, tile_m, num_cores):
    tile_m = max(128, _round_up(tile_m, 128))      # lane-aligned, compile-safe
    n128 = _round_up(max(n, 1), 128)
    if num_cores > 1:
        # Ensure at least `num_cores` batch tiles so the grid axis can be
        # sharded across TensorCores on dual-TC chips.
        per_core = _round_up(pl.cdiv(n128, num_cores), 128)
        return min(tile_m, max(128, per_core))
    # Single-TC chips: never split a small batch just to lengthen the grid.
    return min(tile_m, n128)


def pack_params(w1, b1, w2, b2, w3, b3):
    """Pack the 2->20->20->1 MLP parameters into one padded f32 slab.

    Layout of the (dh_pad, dh_pad + 8) slab:
        [:, :dh_pad]     W2^T   (zero padded 20 -> dh_pad)
        [:, dh_pad + 0]  W1[0, :]   (weights for input feature 0)
        [:, dh_pad + 1]  W1[1, :]   (weights for input feature 1)
        [:, dh_pad + 2]  b1
        [:, dh_pad + 3]  b2
        [:, dh_pad + 4]  W3[:, 0]
        [0, dh_pad + 5]  b3
    Call once (outside the hot path) and reuse the result.
    """
    f32 = jnp.float32
    w1 = jnp.asarray(w1, f32)
    w2 = jnp.asarray(w2, f32)
    w3 = jnp.asarray(w3, f32)
    d_in, d_h = w1.shape
    d_out = w3.shape[1]
    assert d_in == 2 and d_out == 1

    dh_pad = _round_up(d_h, 8)                    # 20 -> 24 (sublane multiple)
    p = jnp.zeros((dh_pad, dh_pad + 8), f32)
    p = p.at[:d_h, :d_h].set(w2.T)
    p = p.at[:d_h, dh_pad + 0].set(w1[0, :])
    p = p.at[:d_h, dh_pad + 1].set(w1[1, :])
    p = p.at[:d_h, dh_pad + 2].set(jnp.asarray(b1, f32).reshape(d_h))
    p = p.at[:d_h, dh_pad + 3].set(jnp.asarray(b2, f32).reshape(d_h))
    p = p.at[:d_h, dh_pad + 4].set(w3.reshape(d_h))
    p = p.at[0, dh_pad + 5].set(jnp.asarray(b3, f32).reshape(()))
    return p


def pinn_kernel(x_ref, p_ref, o_ref, *, tanh_bf16=False):
    # x_ref: (2, TM)          feature-major batch tile (batch on lanes)
    # p_ref: (DH, DH + 8)     packed parameter slab (see pack_params)
    # o_ref: (1, TM)          lane-dense output tile
    dh = p_ref.shape[0]
    w2t = p_ref[:, 0:dh]                          # (DH, DH)
    w1c0 = p_ref[:, dh + 0:dh + 1]                # (DH, 1)
    w1c1 = p_ref[:, dh + 1:dh + 2]
    b1 = p_ref[:, dh + 2:dh + 3]
    b2 = p_ref[:, dh + 3:dh + 4]
    w3 = p_ref[:, dh + 4:dh + 5]
    b3 = p_ref[0:1, dh + 5:dh + 6]                # (1, 1)

    x0 = x_ref[0:1, :]                            # (1, TM)
    x1 = x_ref[1:2, :]                            # (1, TM)

    def act(z):
        # Optional bf16 tanh: ~2x EUP throughput on v6e/v7x (the binding slot
        # here).  Off by default so the 1e-5 check vs the f32 reference holds;
        # no bf16 EUP path on v5e.
        if tanh_bf16:
            return jnp.tanh(z.astype(jnp.bfloat16)).astype(jnp.float32)
        return jnp.tanh(z)

    # Layer 1 (2 -> DH) on the VPU: two broadcast FMAs instead of a K=2 matmul.
    h1 = act(w1c0 * x0 + w1c1 * x1 + b1)

    # Layer 2 (DH -> DH): the only real GEMM; tiny at DH=24 and hidden under
    # the tanh (EUP) critical path, so keep full f32 precision.
    h2 = act(
        jnp.dot(
            w2t,
            h1,
            preferred_element_type=jnp.float32,
            precision=jax.lax.Precision.HIGHEST,
        )
        + b2
    )

    # Layer 3 (DH -> 1) off the MXU: broadcast-mul + sublane reduce (XLU).
    out = jnp.sum(w3 * h2, axis=0, keepdims=True) + b3
    o_ref[...] = out.astype(o_ref.dtype)


def _forward_fm(x_fm, packed, tile_m):
    d_in, n = x_fm.shape
    assert d_in == 2, "PINN input must have 2 features (x, t)"
    dh_pad, p_cols = packed.shape

    num_cores = _tpu_num_cores()
    tm = _choose_tile(n, tile_m, num_cores)
    n_pad = _round_up(n, tm)
    grid = (n_pad // tm,)

    f32 = jnp.float32
    x_fm = jnp.pad(x_fm.astype(f32), ((0, 0), (0, n_pad - n)))
    packed = packed.astype(f32)

    # Only CORE_PARALLEL actually shards the grid axis across TensorCores on
    # dual-TC chips (v7x); plain "parallel" is kept elsewhere.
    if num_cores > 1 and grid[0] >= num_cores and grid[0] % num_cores == 0:
        dim_sem = (pltpu.CORE_PARALLEL,)
    else:
        dim_sem = ("parallel",)

    out_fm = pl.pallas_call(
        functools.partial(pinn_kernel, tanh_bf16=False),
        out_shape=jax.ShapeDtypeStruct((1, n_pad), f32),
        grid_spec=pltpu.PrefetchScalarGridSpec(
            num_scalar_prefetch=0,
            grid=grid,
            in_specs=[
                pl.BlockSpec((d_in, tm), lambda i: (0, i)),        # x tile (batch on lanes)
                pl.BlockSpec((dh_pad, p_cols), lambda i: (0, 0)),  # packed param slab
            ],
            out_specs=pl.BlockSpec((1, tm), lambda i: (0, i)),     # lane-dense output
        ),
        compiler_params=pltpu.CompilerParams(dimension_semantics=dim_sem),
    )(x_fm, packed)

    return out_fm[:, :n]


@functools.partial(jax.jit, static_argnames=("tile_m",))
def pinn_forward_fm(x_fm, packed, *, tile_m=16384):
    """Feature-major entry point: x_fm is (2, N); returns (1, N)."""
    return _forward_fm(x_fm, packed, tile_m)


@functools.partial(jax.jit, static_argnames=("tile_m",))
def pinn_forward(x, packed, *, tile_m=16384):
    """PyTorch-style entry point: x is (N, 2); returns (N, 1).

    The (N,2)->(2,N) relayout here is plumbing only; generate collocation
    points feature-major and call pinn_forward_fm to skip it entirely.
    """
    out_fm = _forward_fm(x.T, packed, tile_m)
    return out_fm.T.astype(x.dtype)


def init_params(key):
    """Deterministic init mimicking PyTorch nn.Linear (U(-1/sqrt(fan_in), +...))."""
    def linear(key, fan_in, fan_out):
        kw, kb = jax.random.split(key)
        bound = 1.0 / jnp.sqrt(fan_in)
        w = jax.random.uniform(kw, (fan_in, fan_out), jnp.float32, -bound, bound)
        b = jax.random.uniform(kb, (1, fan_out), jnp.float32, -bound, bound)
        return w, b

    k1, k2, k3 = jax.random.split(key, 3)
    w1, b1 = linear(k1, 2, 20)
    w2, b2 = linear(k2, 20, 20)
    w3, b3 = linear(k3, 20, 1)
    return w1, b1, w2, b2, w3, b3


def reference_forward(x, w1, b1, w2, b2, w3, b3):
    hp = jax.lax.Precision.HIGHEST
    h1 = jnp.tanh(jnp.dot(x, w1, precision=hp) + b1)
    h2 = jnp.tanh(jnp.dot(h1, w2, precision=hp) + b2)
    return jnp.dot(h2, w3, precision=hp) + b3


if __name__ == "__main__":
    key = jax.random.PRNGKey(0)
    k_params, k_x, k_x2 = jax.random.split(key, 3)

    w1, b1, w2, b2, w3, b3 = init_params(k_params)
    packed = pack_params(w1, b1, w2, b2, w3, b3)   # packed once, reused (hoisted)

    # Small batch of (x, t) collocation points; deliberately NOT a multiple of
    # 128 to exercise the padded-tail path.
    N = 200
    x = jax.random.uniform(k_x, (N, 2), jnp.float32)
    ref = reference_forward(x, w1, b1, w2, b2, w3, b3)

    # (N, 2) PyTorch-style interface.
    out = jax.block_until_ready(pinn_forward(x, packed))
    assert out.shape == (N, 1), out.shape
    assert jnp.allclose(out, ref, atol=1e-5, rtol=1e-5), "mismatch vs reference"

    # Feature-major interface (skips the wrapper transpose pass entirely).
    out_fm = jax.block_until_ready(pinn_forward_fm(x.T, packed))
    assert out_fm.shape == (1, N), out_fm.shape
    assert jnp.allclose(out_fm.T, ref, atol=1e-5, rtol=1e-5), "mismatch (fm) vs reference"

    # Multi-tile grid path (small forced tile -> several grid steps + padded tail).
    N2 = 1000
    x2 = jax.random.uniform(k_x2, (N2, 2), jnp.float32)
    out2 = jax.block_until_ready(pinn_forward(x2, packed, tile_m=256))
    ref2 = reference_forward(x2, w1, b1, w2, b2, w3, b3)
    assert out2.shape == (N2, 1), out2.shape
    assert jnp.allclose(out2, ref2, atol=1e-5, rtol=1e-5), "mismatch (multi-tile)"

    print("KERNEL_OK")
</pallas_src>

<mosaic_0001>
module attributes {stable_mosaic.version = 11 : i64} {
  func.func @pinn_kernel(%arg0: i32, %arg1: memref<2x256xf32, #tpu.memory_space<vmem>>, %arg2: memref<24x32xf32, #tpu.memory_space<vmem>>, %arg3: memref<1x256xf32, #tpu.memory_space<vmem>>) attributes {dimension_semantics = [#tpu.dimension_semantics<parallel>], iteration_bounds = array<i64: 1>, scalar_prefetch = 0 : i64, scratch_operands = 0 : i64, tpu.core_type = #tpu.core_type<tc>, window_params = [{transform_indices = @transform_0, window_bounds = array<i64: 2, 256>}, {pipeline_mode = #tpu.pipeline_mode<synchronous>, transform_indices = @transform_1, window_bounds = array<i64: 24, 32>}, {transform_indices = @transform_2, window_bounds = array<i64: 1, 256>}]} {
    %c0 = arith.constant 0 : index
    %c0_0 = arith.constant 0 : index
    %0 = vector.load %arg2[%c0, %c0_0] : memref<24x32xf32, #tpu.memory_space<vmem>>, vector<24x24xf32>
    %c0_1 = arith.constant 0 : index
    %c24 = arith.constant 24 : index
    %1 = vector.load %arg2[%c0_1, %c24] : memref<24x32xf32, #tpu.memory_space<vmem>>, vector<24x1xf32>
    %c0_2 = arith.constant 0 : index
    %c25 = arith.constant 25 : index
    %2 = vector.load %arg2[%c0_2, %c25] : memref<24x32xf32, #tpu.memory_space<vmem>>, vector<24x1xf32>
    %c0_3 = arith.constant 0 : index
    %c26 = arith.constant 26 : index
    %3 = vector.load %arg2[%c0_3, %c26] : memref<24x32xf32, #tpu.memory_space<vmem>>, vector<24x1xf32>
    %c0_4 = arith.constant 0 : index
    %c27 = arith.constant 27 : index
    %4 = vector.load %arg2[%c0_4, %c27] : memref<24x32xf32, #tpu.memory_space<vmem>>, vector<24x1xf32>
    %c0_5 = arith.constant 0 : index
    %c28 = arith.constant 28 : index
    %5 = vector.load %arg2[%c0_5, %c28] : memref<24x32xf32, #tpu.memory_space<vmem>>, vector<24x1xf32>
    %c0_6 = arith.constant 0 : index
    %c29 = arith.constant 29 : index
    %6 = vector.load %arg2[%c0_6, %c29] : memref<24x32xf32, #tpu.memory_space<vmem>>, vector<1x1xf32>
    %c0_7 = arith.constant 0 : index
    %c0_8 = arith.constant 0 : index
    %7 = vector.load %arg1[%c0_7, %c0_8] : memref<2x256xf32, #tpu.memory_space<vmem>>, vector<1x256xf32>
    %c1 = arith.constant 1 : index
    %c0_9 = arith.constant 0 : index
    %8 = vector.load %arg1[%c1, %c0_9] : memref<2x256xf32, #tpu.memory_space<vmem>>, vector<1x256xf32>
    %9 = vector.broadcast %1 : vector<24x1xf32> to vector<24x256xf32>
    %10 = vector.broadcast %7 : vector<1x256xf32> to vector<24x256xf32>
    %11 = arith.mulf %9, %10 : vector<24x256xf32>
    %12 = vector.broadcast %2 : vector<24x1xf32> to vector<24x256xf32>
    %13 = vector.broadcast %8 : vector<1x256xf32> to vector<24x256xf32>
    %14 = arith.mulf %12, %13 : vector<24x256xf32>
    %15 = arith.addf %11, %14 : vector<24x256xf32>
    %16 = vector.broadcast %3 : vector<24x1xf32> to vector<24x256xf32>
    %17 = arith.addf %15, %16 : vector<24x256xf32>
    %18 = math.tanh %17 : vector<24x256xf32>
    %cst = arith.constant dense<0.000000e+00> : vector<24x256xf32>
    %19 = tpu.matmul %0, %18, %cst {dimension_numbers = #tpu.dot_dimension_numbers<[1], [0], [0], [1], [0, 0, 1, 1], [], []>, precision = #tpu.contract_precision<fp32>} : vector<24x24xf32>, vector<24x256xf32>, vector<24x256xf32> -> vector<24x256xf32>
    %20 = vector.broadcast %4 : vector<24x1xf32> to vector<24x256xf32>
    %21 = arith.addf %19, %20 : vector<24x256xf32>
    %22 = math.tanh %21 : vector<24x256xf32>
    %23 = vector.broadcast %5 : vector<24x1xf32> to vector<24x256xf32>
    %24 = arith.mulf %23, %22 : vector<24x256xf32>
    %cst_10 = arith.constant dense<0.000000e+00> : vector<256xf32>
    %25 = vector.multi_reduction <add>, %24, %cst_10 [0] : vector<24x256xf32> to vector<256xf32>
    %26 = vector.shape_cast %25 : vector<256xf32> to vector<1x256xf32>
    %27 = vector.broadcast %6 : vector<1x1xf32> to vector<1x256xf32>
    %28 = arith.addf %26, %27 : vector<1x256xf32>
    %c0_11 = arith.constant 0 : index
    %c0_12 = arith.constant 0 : index
    %29 = vector.load %arg3[%c0_11, %c0_12] : memref<1x256xf32, #tpu.memory_space<vmem>>, vector<1x256xf32>
    tpu.vector_store %arg3[%c0_11, %c0_12], %28 {strides = array<i32>} : memref<1x256xf32, #tpu.memory_space<vmem>>, vector<1x256xf32>,
    return
  }
  func.func @transform_0(%arg0: i32) -> (i32, i32) {
    %c0_i32 = arith.constant 0 : i32
    %c0_i32_0 = arith.constant 0 : i32
    return %c0_i32, %arg0 : i32, i32
  }
  func.func @transform_1(%arg0: i32) -> (i32, i32) {
    %c0_i32 = arith.constant 0 : i32
    %c0_i32_0 = arith.constant 0 : i32
    %c0_i32_1 = arith.constant 0 : i32
    return %c0_i32, %c0_i32_0 : i32, i32
  }
  func.func @transform_2(%arg0: i32) -> (i32, i32) {
    %c0_i32 = arith.constant 0 : i32
    %c0_i32_0 = arith.constant 0 : i32
    return %c0_i32, %arg0 : i32, i32
  }
}

</mosaic_0001>

<llo_original>
// kernel: pinn_forward.1
$region0: #{pinn_forward.1}
  #allocation0 [shape = 'u32[]', space=smem, size = 0x4, offset = 0x4, fixed_abs, tag = 'smem constant byte address 0x4 - core index']
  #allocation1 [shape = 'u32[72,128]{1,0:T(1,128)}', space=vmem, size = 0x9000, scoped, tag = 'internal scratch']
  %s0 = inlined_call_operand.vmem [shape: f32[2,256], index: 0, kind: input, shape index: {}]
  %s1 = inlined_call_operand.hbm [shape: f32[24,32], index: 1, kind: input, shape index: {}]
  %s2 = inlined_call_operand.vmem [shape: f32[1,256], index: 2, kind: output, shape index: {}]
  %s3 = sld [smem:[#allocation0]]
  $region22: #{pinn_forward.1} parent=0
    _
  %s5 = ssub.s32 1, %s3
  %s6 = scalar_select 0, %s5, %s3
  $region1: #{pinn_forward.1} parent=0
    #allocation2 [shape = 'u8[12288]{0}', space=vmem, size = 0x3000, scoped, tag = 'input window, operand 1, single buffered']
    #allocation3 [shape = 's32[1]{0}', space=sflag, size = 0x4, scoped, tag = 'scoped memory for pinn_forward.1']
    %7 = vsyncpa [#allocation3], 0
    // Predicated region
    $region2: #{pinn_forward.1} parent=1 // pred_check
      _
    $region3: #{pinn_forward.1} parent=1 // pred_check_branch
      %9 = sbr.rel (0) target = $region5
    $region4: #{pinn_forward.1} parent=1 // pred_region
      _
    $region5: #{pinn_forward.1} parent=1 // pred_fallthru
      _
    // Predicated region
    $region6: #{pinn_forward.1} parent=1 // pred_check
      _
    $region7: #{pinn_forward.1} parent=1 // pred_check_branch
      %11 = sbr.rel (0) target = $region9
    $region8: #{pinn_forward.1} parent=1 // pred_region
      %13 = vsyncadd [#allocation3], 0
      %s14 = sshll.u32 %s1, 4
      %s15 = int_to_ptr.hbm [resolvable:$true] %s14
      %s16 = sshll.u32 [#allocation2], 4
      %s17 = int_to_ptr.vmem [resolvable:$true] %s16
      %22 = dma.hbm_to_vmem [thread:$0]  %s15, 384, %s17, [#allocation3], 128, 128, 8
    $region9: #{pinn_forward.1} parent=1 // pred_fallthru
      _
    // Predicated region
    $region10: #{pinn_forward.1} parent=1 // pred_check
      _
    $region11: #{pinn_forward.1} parent=1 // pred_check_branch
      %24 = sbr.rel (0) target = $region13
    $region12: #{pinn_forward.1} parent=1 // pred_region
      %26 = dma.done [#allocation3], 384
    $region13: #{pinn_forward.1} parent=1 // pred_fallthru
      _
    %v27 = vld [vmem:[#allocation2] sm:$0xff]
    %v28 = vld [vmem:[#allocation2 + $0x8] sm:$0xff]
    %v29 = vld [vmem:[#allocation2 + $0x10] sm:$0xff]
    %v30 = vld [vmem:[#allocation2] sm:$0x1]
    %v31 = vld [vmem:[%s0] ss:$2 sm:$0x3]
    %s32 = scalar_lea.vmem %s0, 1
    %v33 = vld [vmem:[%s32] ss:$2 sm:$0x3]
    %35 = vset.pattern.permute.xlu0 24
    %36 = vperm.xlu0 %35, %v27
    %v37 = vpop.permute.xlu0 %36
    %40 = vset.pattern.permute.xlu0 24
    %41 = vperm.xlu0 %40, %v28
    %v42 = vpop.permute.xlu0 %41
    %45 = vset.pattern.permute.xlu0 24
    %46 = vperm.xlu0 %45, %v29
    %v47 = vpop.permute.xlu0 %46
    %v50 = vperm.slane %v31, 0
    %v51 = vperm.slane %v31, 1
    %v54 = vmul.f32 %v37, %v50
    %v55 = vmul.f32 %v37, %v51
    %v56 = vmul.f32 %v42, %v50
    %v57 = vmul.f32 %v42, %v51
    %v58 = vmul.f32 %v47, %v50
    %v59 = vmul.f32 %v47, %v51
    %60 = vset.pattern.permute.xlu0 25
    %61 = vperm.xlu0 %60, %v27
    %v62 = vpop.permute.xlu0 %61
    %64 = vset.pattern.permute.xlu0 25
    %65 = vperm.xlu0 %64, %v28
    %v66 = vpop.permute.xlu0 %65
    %68 = vset.pattern.permute.xlu0 25
    %69 = vperm.xlu0 %68, %v29
    %v70 = vpop.permute.xlu0 %69
    %v73 = vperm.slane %v33, 0
    %v74 = vperm.slane %v33, 1
    %v77 = vmul.f32 %v62, %v73
    %v78 = vmul.f32 %v62, %v74
    %v79 = vmul.f32 %v66, %v73
    %v80 = vmul.f32 %v66, %v74
    %v81 = vmul.f32 %v70, %v73
    %v82 = vmul.f32 %v70, %v74
    %v83 = vadd.f32 %v54, %v77
    %v84 = vadd.f32 %v55, %v78
    %v85 = vadd.f32 %v56, %v79
    %v86 = vadd.f32 %v57, %v80
    %v87 = vadd.f32 %v58, %v81
    %v88 = vadd.f32 %v59, %v82
    %89 = vset.pattern.permute.xlu0 26
    %90 = vperm.xlu0 %89, %v27
    %v91 = vpop.permute.xlu0 %90
    %93 = vset.pattern.permute.xlu0 26
    %94 = vperm.xlu0 %93, %v28
    %v95 = vpop.permute.xlu0 %94
    %97 = vset.pattern.permute.xlu0 26
    %98 = vperm.xlu0 %97, %v29
    %v99 = vpop.permute.xlu0 %98
    %v101 = vadd.f32 %v83, %v91
    %v102 = vadd.f32 %v84, %v91
    %v103 = vadd.f32 %v85, %v95
    %v104 = vadd.f32 %v86, %v95
    %v105 = vadd.f32 %v87, %v99
    %v106 = vadd.f32 %v88, %v99
    %v107 = vtanh.pop %v101
    %v108 = vtanh.pop %v102
    %v109 = vtanh.pop %v103
    %v110 = vtanh.pop %v104
    %v111 = vtanh.pop %v105
    %v112 = vtanh.pop %v106
    %113 = vset.pattern.permute.xlu0 27
    %114 = vperm.xlu0 %113, %v27
    %v115 = vpop.permute.xlu0 %114
    %117 = vset.pattern.permute.xlu0 27
    %118 = vperm.xlu0 %117, %v28
    %v119 = vpop.permute.xlu0 %118
    %121 = vset.pattern.permute.xlu0 27
    %122 = vperm.xlu0 %121, %v29
    %v123 = vpop.permute.xlu0 %122
    %vm125 = vcmask 195584
    %v126 = vsel %vm125, %v27, 0
    %v128 = vsel %vm125, %v28, 0
    %v130 = vsel %vm125, %v29, 0
    %132 = vmatpush.msra.mxu0 0.0
    %133 = vmatpush.msra.mxu0 0.0
    %134 = vmatpush.msra.mxu0 0.0
    %135 = vmatpush.msra.mxu0 0.0
    %136 = vmatpush.msra.mxu0 0.0
    %137 = vmatpush.msra.mxu0 0.0
    %138 = vmatpush.msra.mxu0 0.0
    %139 = vmatpush.msra.mxu0 0.0
    %140 = vmatpush.msra.mxu0 0.0
    %141 = vmatpush.msra.mxu0 0.0
    %142 = vmatpush.msra.mxu0 0.0
    %143 = vmatpush.msra.mxu0 0.0
    %144 = vmatpush.msra.mxu0 0.0
    %v145 = vand.u32 %v111, 4294901760
    %146 = vmatpush.msra.mxu0 %v145
    %v147 = vand.u32 %v109, 4294901760
    %148 = vmatpush.msra.mxu0 %v147
    %v149 = vand.u32 %v107, 4294901760
    %150 = vmatpush.msra.mxu0 %v149
    %v151 = vand.u32 %v126, 4294901760
    %v152 = vsub.f32 %v126, %v151
    %v153 = vand.u32 %v152, 4294901760
    %v154 = vsub.f32 %v152, %v153
    %v155 = vand.u32 %v154, 4294901760
    %156 = vmatmul.f32.gmra.mxu0 %v155
    %v157 = vpop.f32.mrf.mxu0
    %v158 = vadd.f32 %v115, %v157
    %v159 = vand.u32 %v128, 4294901760
    %v160 = vsub.f32 %v128, %v159
    %v161 = vand.u32 %v160, 4294901760
    %v162 = vsub.f32 %v160, %v161
    %v163 = vand.u32 %v162, 4294901760
    %164 = vmatmul.f32.gmra.mxu0 %v163
    %v165 = vpop.f32.mrf.mxu0
    %v166 = vadd.f32 %v119, %v165
    %v167 = vand.u32 %v130, 4294901760
    %v168 = vsub.f32 %v130, %v167
    %v169 = vand.u32 %v168, 4294901760
    %v170 = vsub.f32 %v168, %v169
    %v171 = vand.u32 %v170, 4294901760
    %172 = vmatmul.f32.gmra.mxu0 %v171
    %v173 = vpop.f32.mrf.mxu0
    %v174 = vadd.f32 %v123, %v173
    %175 = vdwg.mxu0
    %176 = vmatpush.msra.mxu0 0.0
    %177 = vmatpush.msra.mxu0 0.0
    %178 = vmatpush.msra.mxu0 0.0
    %179 = vmatpush.msra.mxu0 0.0
    %180 = vmatpush.msra.mxu0 0.0
    %181 = vmatpush.msra.mxu0 0.0
    %182 = vmatpush.msra.mxu0 0.0
    %183 = vmatpush.msra.mxu0 0.0
    %184 = vmatpush.msra.mxu0 0.0
    %185 = vmatpush.msra.mxu0 0.0
    %186 = vmatpush.msra.mxu0 0.0
    %187 = vmatpush.msra.mxu0 0.0
    %188 = vmatpush.msra.mxu0 0.0
    %v189 = vand.u32 %v111, 4294901760
    %v190 = vsub.f32 %v111, %v189
    %v191 = vand.u32 %v190, 4294901760
    %v192 = vsub.f32 %v190, %v191
    %v193 = vand.u32 %v192, 4294901760
    %194 = vmatpush.msra.mxu0 %v193
    %v195 = vand.u32 %v109, 4294901760
    %v196 = vsub.f32 %v109, %v195
    %v197 = vand.u32 %v196, 4294901760
    %v198 = vsub.f32 %v196, %v197
    %v199 = vand.u32 %v198, 4294901760
    %200 = vmatpush.msra.mxu0 %v199
    %v201 = vand.u32 %v107, 4294901760
    %v202 = vsub.f32 %v107, %v201
    %v203 = vand.u32 %v202, 4294901760
    %v204 = vsub.f32 %v202, %v203
    %v205 = vand.u32 %v204, 4294901760
    %206 = vmatpush.msra.mxu0 %v205
    %v207 = vand.u32 %v126, 4294901760
    %208 = vmatmul.f32.gmra.mxu0 %v207
    %v209 = vpop.f32.mrf.mxu0
    %v210 = vadd.f32 %v158, %v209
    %v211 = vand.u32 %v128, 4294901760
    %212 = vmatmul.f32.gmra.mxu0 %v211
    %v213 = vpop.f32.mrf.mxu0
    %v214 = vadd.f32 %v166, %v213
    %v215 = vand.u32 %v130, 4294901760
    %216 = vmatmul.f32.gmra.mxu0 %v215
    %v217 = vpop.f32.mrf.mxu0
    %v218 = vadd.f32 %v174, %v217
    %219 = vdwg.mxu0
    %220 = vmatpush.msra.mxu0 0.0
    %221 = vmatpush.msra.mxu0 0.0
    %222 = vmatpush.msra.mxu0 0.0
    %223 = vmatpush.msra.mxu0 0.0
    %224 = vmatpush.msra.mxu0 0.0
    %225 = vmatpush.msra.mxu0 0.0
    %226 = vmatpush.msra.mxu0 0.0
    %227 = vmatpush.msra.mxu0 0.0
    %228 = vmatpush.msra.mxu0 0.0
    %229 = vmatpush.msra.mxu0 0.0
    %230 = vmatpush.msra.mxu0 0.0
    %231 = vmatpush.msra.mxu0 0.0
    %232 = vmatpush.msra.mxu0 0.0
    %v233 = vand.u32 %v111, 4294901760
    %v234 = vsub.f32 %v111, %v233
    %235 = vmatpush.msra.mxu0 %v234
    %v236 = vand.u32 %v109, 4294901760
    %v237 = vsub.f32 %v109, %v236
    %238 = vmatpush.msra.mxu0 %v237
    %v239 = vand.u32 %v107, 4294901760
    %v240 = vsub.f32 %v107, %v239
    %241 = vmatpush.msra.mxu0 %v240
    %v242 = vand.u32 %v126, 4294901760
    %v243 = vsub.f32 %v126, %v242
    %244 = vmatmul.f32.gmra.mxu0 %v243
    %v245 = vpop.f32.mrf.mxu0
    %v246 = vadd.f32 %v210, %v245
    %v247 = vand.u32 %v128, 4294901760
    %v248 = vsub.f32 %v128, %v247
    %249 = vmatmul.f32.gmra.mxu0 %v248
    %v250 = vpop.f32.mrf.mxu0
    %v251 = vadd.f32 %v214, %v250
    %v252 = vand.u32 %v130, 4294901760
    %v253 = vsub.f32 %v130, %v252
    %254 = vmatmul.f32.gmra.mxu0 %v253
    %v255 = vpop.f32.mrf.mxu0
    %v256 = vadd.f32 %v218, %v255
    %257 = vdwg.mxu0
    %258 = vmatpush.msra.mxu0 0.0
    %259 = vmatpush.msra.mxu0 0.0
    %260 = vmatpush.msra.mxu0 0.0
    %261 = vmatpush.msra.mxu0 0.0
    %262 = vmatpush.msra.mxu0 0.0
    %263 = vmatpush.msra.mxu0 0.0
    %264 = vmatpush.msra.mxu0 0.0
    %265 = vmatpush.msra.mxu0 0.0
    %266 = vmatpush.msra.mxu0 0.0
    %267 = vmatpush.msra.mxu0 0.0
    %268 = vmatpush.msra.mxu0 0.0
    %269 = vmatpush.msra.mxu0 0.0
    %270 = vmatpush.msra.mxu0 0.0
    %v271 = vand.u32 %v111, 4294901760
    %272 = vmatpush.msra.mxu0 %v271
    %v273 = vand.u32 %v109, 4294901760
    %274 = vmatpush.msra.mxu0 %v273
    %v275 = vand.u32 %v107, 4294901760
    %276 = vmatpush.msra.mxu0 %v275
    %v277 = vand.u32 %v126, 4294901760
    %v278 = vsub.f32 %v126, %v277
    %v279 = vand.u32 %v278, 4294901760
    %280 = vmatmul.f32.gmra.mxu0 %v279
    %v281 = vpop.f32.mrf.mxu0
    %v282 = vadd.f32 %v246, %v281
    %v283 = vand.u32 %v128, 4294901760
    %v284 = vsub.f32 %v128, %v283
    %v285 = vand.u32 %v284, 4294901760
    %286 = vmatmul.f32.gmra.mxu0 %v285
    %v287 = vpop.f32.mrf.mxu0
    %v288 = vadd.f32 %v251, %v287
    %v289 = vand.u32 %v130, 4294901760
    %v290 = vsub.f32 %v130, %v289
    %v291 = vand.u32 %v290, 4294901760
    %292 = vmatmul.f32.gmra.mxu0 %v291
    %v293 = vpop.f32.mrf.mxu0
    %v294 = vadd.f32 %v256, %v293
    %295 = vdwg.mxu0
    %296 = vmatpush.msra.mxu0 0.0
    %297 = vmatpush.msra.mxu0 0.0
    %298 = vmatpush.msra.mxu0 0.0
    %299 = vmatpush.msra.mxu0 0.0
    %300 = vmatpush.msra.mxu0 0.0
    %301 = vmatpush.msra.mxu0 0.0
    %302 = vmatpush.msra.mxu0 0.0
    %303 = vmatpush.msra.mxu0 0.0
    %304 = vmatpush.msra.mxu0 0.0
    %305 = vmatpush.msra.mxu0 0.0
    %306 = vmatpush.msra.mxu0 0.0
    %307 = vmatpush.msra.mxu0 0.0
    %308 = vmatpush.msra.mxu0 0.0
    %v309 = vand.u32 %v111, 4294901760
    %v310 = vsub.f32 %v111, %v309
    %v311 = vand.u32 %v310, 4294901760
    %312 = vmatpush.msra.mxu0 %v311
    %v313 = vand.u32 %v109, 4294901760
    %v314 = vsub.f32 %v109, %v313
    %v315 = vand.u32 %v314, 4294901760
    %316 = vmatpush.msra.mxu0 %v315
    %v317 = vand.u32 %v107, 4294901760
    %v318 = vsub.f32 %v107, %v317
    %v319 = vand.u32 %v318, 4294901760
    %320 = vmatpush.msra.mxu0 %v319
    %v321 = vand.u32 %v126, 4294901760
    %322 = vmatmul.f32.gmra.mxu0 %v321
    %v323 = vpop.f32.mrf.mxu0
    %v324 = vadd.f32 %v282, %v323
    %v325 = vand.u32 %v128, 4294901760
    %326 = vmatmul.f32.gmra.mxu0 %v325
    %v327 = vpop.f32.mrf.mxu0
    %v328 = vadd.f32 %v288, %v327
    %v329 = vand.u32 %v130, 4294901760
    %330 = vmatmul.f32.gmra.mxu0 %v329
    %v331 = vpop.f32.mrf.mxu0
    %v332 = vadd.f32 %v294, %v331
    %333 = vdwg.mxu0
    %334 = vmatpush.msra.mxu0 0.0
    %335 = vmatpush.msra.mxu0 0.0
    %336 = vmatpush.msra.mxu0 0.0
    %337 = vmatpush.msra.mxu0 0.0
    %338 = vmatpush.msra.mxu0 0.0
    %339 = vmatpush.msra.mxu0 0.0
    %340 = vmatpush.msra.mxu0 0.0
    %341 = vmatpush.msra.mxu0 0.0
    %342 = vmatpush.msra.mxu0 0.0
    %343 = vmatpush.msra.mxu0 0.0
    %344 = vmatpush.msra.mxu0 0.0
    %345 = vmatpush.msra.mxu0 0.0
    %346 = vmatpush.msra.mxu0 0.0
    %v347 = vand.u32 %v111, 4294901760
    %348 = vmatpush.msra.mxu0 %v347
    %v349 = vand.u32 %v109, 4294901760
    %350 = vmatpush.msra.mxu0 %v349
    %v351 = vand.u32 %v107, 4294901760
    %352 = vmatpush.msra.mxu0 %v351
    %v353 = vand.u32 %v126, 4294901760
    %354 = vmatmul.f32.gmra.mxu0 %v353
    %v355 = vpop.f32.mrf.mxu0
    %v356 = vadd.f32 %v324, %v355
    %v357 = vand.u32 %v128, 4294901760
    %358 = vmatmul.f32.gmra.mxu0 %v357
    %v359 = vpop.f32.mrf.mxu0
    %v360 = vadd.f32 %v328, %v359
    %v361 = vand.u32 %v130, 4294901760
    %362 = vmatmul.f32.gmra.mxu0 %v361
    %v363 = vpop.f32.mrf.mxu0
    %v364 = vadd.f32 %v332, %v363
    %365 = vdwg.mxu0
    %366 = vmatpush.msra.mxu0 0.0
    %367 = vmatpush.msra.mxu0 0.0
    %368 = vmatpush.msra.mxu0 0.0
    %369 = vmatpush.msra.mxu0 0.0
    %370 = vmatpush.msra.mxu0 0.0
    %371 = vmatpush.msra.mxu0 0.0
    %372 = vmatpush.msra.mxu0 0.0
    %373 = vmatpush.msra.mxu0 0.0
    %374 = vmatpush.msra.mxu0 0.0
    %375 = vmatpush.msra.mxu0 0.0
    %376 = vmatpush.msra.mxu0 0.0
    %377 = vmatpush.msra.mxu0 0.0
    %378 = vmatpush.msra.mxu0 0.0
    %v379 = vand.u32 %v112, 4294901760
    %380 = vmatpush.msra.mxu0 %v379
    %v381 = vand.u32 %v110, 4294901760
    %382 = vmatpush.msra.mxu0 %v381
    %v383 = vand.u32 %v108, 4294901760
    %384 = vmatpush.msra.mxu0 %v383
    %v385 = vand.u32 %v126, 4294901760
    %v386 = vsub.f32 %v126, %v385
    %v387 = vand.u32 %v386, 4294901760
    %v388 = vsub.f32 %v386, %v387
    %v389 = vand.u32 %v388, 4294901760
    %390 = vmatmul.f32.gmra.mxu0 %v389
    %v391 = vpop.f32.mrf.mxu0
    %v392 = vadd.f32 %v115, %v391
    %v393 = vand.u32 %v128, 4294901760
    %v394 = vsub.f32 %v128, %v393
    %v395 = vand.u32 %v394, 4294901760
    %v396 = vsub.f32 %v394, %v395
    %v397 = vand.u32 %v396, 4294901760
    %398 = vmatmul.f32.gmra.mxu0 %v397
    %v399 = vpop.f32.mrf.mxu0
    %v400 = vadd.f32 %v119, %v399
    %v401 = vand.u32 %v130, 4294901760
    %v402 = vsub.f32 %v130, %v401
    %v403 = vand.u32 %v402, 4294901760
    %v404 = vsub.f32 %v402, %v403
    %v405 = vand.u32 %v404, 4294901760
    %406 = vmatmul.f32.gmra.mxu0 %v405
    %v407 = vpop.f32.mrf.mxu0
    %v408 = vadd.f32 %v123, %v407
    %409 = vdwg.mxu0
    %410 = vmatpush.msra.mxu0 0.0
    %411 = vmatpush.msra.mxu0 0.0
    %412 = vmatpush.msra.mxu0 0.0
    %413 = vmatpush.msra.mxu0 0.0
    %414 = vmatpush.msra.mxu0 0.0
    %415 = vmatpush.msra.mxu0 0.0
    %416 = vmatpush.msra.mxu0 0.0
    %417 = vmatpush.msra.mxu0 0.0
    %418 = vmatpush.msra.mxu0 0.0
    %419 = vmatpush.msra.mxu0 0.0
    %420 = vmatpush.msra.mxu0 0.0
    %421 = vmatpush.msra.mxu0 0.0
    %422 = vmatpush.msra.mxu0 0.0
    %v423 = vand.u32 %v112, 4294901760
    %v424 = vsub.f32 %v112, %v423
    %v425 = vand.u32 %v424, 4294901760
    %v426 = vsub.f32 %v424, %v425
    %v427 = vand.u32 %v426, 4294901760
    %428 = vmatpush.msra.mxu0 %v427
    %v429 = vand.u32 %v110, 4294901760
    %v430 = vsub.f32 %v110, %v429
    %v431 = vand.u32 %v430, 4294901760
    %v432 = vsub.f32 %v430, %v431
    %v433 = vand.u32 %v432, 4294901760
    %434 = vmatpush.msra.mxu0 %v433
    %v435 = vand.u32 %v108, 4294901760
    %v436 = vsub.f32 %v108, %v435
    %v437 = vand.u32 %v436, 4294901760
    %v438 = vsub.f32 %v436, %v437
    %v439 = vand.u32 %v438, 4294901760
    %440 = vmatpush.msra.mxu0 %v439
    %v441 = vand.u32 %v126, 4294901760
    %442 = vmatmul.f32.gmra.mxu0 %v441
    %v443 = vpop.f32.mrf.mxu0
    %v444 = vadd.f32 %v392, %v443
    %v445 = vand.u32 %v128, 4294901760
    %446 = vmatmul.f32.gmra.mxu0 %v445
    %v447 = vpop.f32.mrf.mxu0
    %v448 = vadd.f32 %v400, %v447
    %v449 = vand.u32 %v130, 4294901760
    %450 = vmatmul.f32.gmra.mxu0 %v449
    %v451 = vpop.f32.mrf.mxu0
    %v452 = vadd.f32 %v408, %v451
    %453 = vdwg.mxu0
    %454 = vmatpush.msra.mxu0 0.0
    %455 = vmatpush.msra.mxu0 0.0
    %456 = vmatpush.msra.mxu0 0.0
    %457 = vmatpush.msra.mxu0 0.0
    %458 = vmatpush.msra.mxu0 0.0
    %459 = vmatpush.msra.mxu0 0.0
    %460 = vmatpush.msra.mxu0 0.0
    %461 = vmatpush.msra.mxu0 0.0
    %462 = vmatpush.msra.mxu0 0.0
    %463 = vmatpush.msra.mxu0 0.0
    %464 = vmatpush.msra.mxu0 0.0
    %465 = vmatpush.msra.mxu0 0.0
    %466 = vmatpush.msra.mxu0 0.0
    %v467 = vand.u32 %v112, 4294901760
    %v468 = vsub.f32 %v112, %v467
    %469 = vmatpush.msra.mxu0 %v468
    %v470 = vand.u32 %v110, 4294901760
    %v471 = vsub.f32 %v110, %v470
    %472 = vmatpush.msra.mxu0 %v471
    %v473 = vand.u32 %v108, 4294901760
    %v474 = vsub.f32 %v108, %v473
    %475 = vmatpush.msra.mxu0 %v474
    %v476 = vand.u32 %v126, 4294901760
    %v477 = vsub.f32 %v126, %v476
    %478 = vmatmul.f32.gmra.mxu0 %v477
    %v479 = vpop.f32.mrf.mxu0
    %v480 = vadd.f32 %v444, %v479
    %v481 = vand.u32 %v128, 4294901760
    %v482 = vsub.f32 %v128, %v481
    %483 = vmatmul.f32.gmra.mxu0 %v482
    %v484 = vpop.f32.mrf.mxu0
    %v485 = vadd.f32 %v448, %v484
    %v486 = vand.u32 %v130, 4294901760
    %v487 = vsub.f32 %v130, %v486
    %488 = vmatmul.f32.gmra.mxu0 %v487
    %v489 = vpop.f32.mrf.mxu0
    %v490 = vadd.f32 %v452, %v489
    %491 = vdwg.mxu0
    %492 = vmatpush.msra.mxu0 0.0
    %493 = vmatpush.msra.mxu0 0.0
    %494 = vmatpush.msra.mxu0 0.0
    %495 = vmatpush.msra.mxu0 0.0
    %496 = vmatpush.msra.mxu0 0.0
    %497 = vmatpush.msra.mxu0 0.0
    %498 = vmatpush.msra.mxu0 0.0
    %499 = vmatpush.msra.mxu0 0.0
    %500 = vmatpush.msra.mxu0 0.0
    %501 = vmatpush.msra.mxu0 0.0
    %502 = vmatpush.msra.mxu0 0.0
    %503 = vmatpush.msra.mxu0 0.0
    %504 = vmatpush.msra.mxu0 0.0
    %v505 = vand.u32 %v112, 4294901760
    %506 = vmatpush.msra.mxu0 %v505
    %v507 = vand.u32 %v110, 4294901760
    %508 = vmatpush.msra.mxu0 %v507
    %v509 = vand.u32 %v108, 4294901760
    %510 = vmatpush.msra.mxu0 %v509
    %v511 = vand.u32 %v126, 4294901760
    %v512 = vsub.f32 %v126, %v511
    %v513 = vand.u32 %v512, 4294901760
    %514 = vmatmul.f32.gmra.mxu0 %v513
    %v515 = vpop.f32.mrf.mxu0
    %v516 = vadd.f32 %v480, %v515
    %v517 = vand.u32 %v128, 4294901760
    %v518 = vsub.f32 %v128, %v517
    %v519 = vand.u32 %v518, 4294901760
    %520 = vmatmul.f32.gmra.mxu0 %v519
    %v521 = vpop.f32.mrf.mxu0
    %v522 = vadd.f32 %v485, %v521
    %v523 = vand.u32 %v130, 4294901760
    %v524 = vsub.f32 %v130, %v523
    %v525 = vand.u32 %v524, 4294901760
    %526 = vmatmul.f32.gmra.mxu0 %v525
    %v527 = vpop.f32.mrf.mxu0
    %v528 = vadd.f32 %v490, %v527
    %529 = vdwg.mxu0
    %530 = vmatpush.msra.mxu0 0.0
    %531 = vmatpush.msra.mxu0 0.0
    %532 = vmatpush.msra.mxu0 0.0
    %533 = vmatpush.msra.mxu0 0.0
    %534 = vmatpush.msra.mxu0 0.0
    %535 = vmatpush.msra.mxu0 0.0
    %536 = vmatpush.msra.mxu0 0.0
    %537 = vmatpush.msra.mxu0 0.0
    %538 = vmatpush.msra.mxu0 0.0
    %539 = vmatpush.msra.mxu0 0.0
    %540 = vmatpush.msra.mxu0 0.0
    %541 = vmatpush.msra.mxu0 0.0
    %542 = vmatpush.msra.mxu0 0.0
    %v543 = vand.u32 %v112, 4294901760
    %v544 = vsub.f32 %v112, %v543
    %v545 = vand.u32 %v544, 4294901760
    %546 = vmatpush.msra.mxu0 %v545
    %v547 = vand.u32 %v110, 4294901760
    %v548 = vsub.f32 %v110, %v547
    %v549 = vand.u32 %v548, 4294901760
    %550 = vmatpush.msra.mxu0 %v549
    %v551 = vand.u32 %v108, 4294901760
    %v552 = vsub.f32 %v108, %v551
    %v553 = vand.u32 %v552, 4294901760
    %554 = vmatpush.msra.mxu0 %v553
    %v555 = vand.u32 %v126, 4294901760
    %556 = vmatmul.f32.gmra.mxu0 %v555
    %v557 = vpop.f32.mrf.mxu0
    %v558 = vadd.f32 %v516, %v557
    %v559 = vand.u32 %v128, 4294901760
    %560 = vmatmul.f32.gmra.mxu0 %v559
    %v561 = vpop.f32.mrf.mxu0
    %v562 = vadd.f32 %v522, %v561
    %v563 = vand.u32 %v130, 4294901760
    %564 = vmatmul.f32.gmra.mxu0 %v563
    %v565 = vpop.f32.mrf.mxu0
    %v566 = vadd.f32 %v528, %v565
    %567 = vdwg.mxu0
    %568 = vmatpush.msra.mxu0 0.0
    %569 = vmatpush.msra.mxu0 0.0
    %570 = vmatpush.msra.mxu0 0.0
    %571 = vmatpush.msra.mxu0 0.0
    %572 = vmatpush.msra.mxu0 0.0
    %573 = vmatpush.msra.mxu0 0.0
    %574 = vmatpush.msra.mxu0 0.0
    %575 = vmatpush.msra.mxu0 0.0
    %576 = vmatpush.msra.mxu0 0.0
    %577 = vmatpush.msra.mxu0 0.0
    %578 = vmatpush.msra.mxu0 0.0
    %579 = vmatpush.msra.mxu0 0.0
    %580 = vmatpush.msra.mxu0 0.0
    %v581 = vand.u32 %v112, 4294901760
    %582 = vmatpush.msra.mxu0 %v581
    %v583 = vand.u32 %v110, 4294901760
    %584 = vmatpush.msra.mxu0 %v583
    %v585 = vand.u32 %v108, 4294901760
    %586 = vmatpush.msra.mxu0 %v585
    %v587 = vand.u32 %v126, 4294901760
    %588 = vmatmul.f32.gmra.mxu0 %v587
    %v589 = vpop.f32.mrf.mxu0
    %v590 = vadd.f32 %v558, %v589
    %v591 = vand.u32 %v128, 4294901760
    %592 = vmatmul.f32.gmra.mxu0 %v591
    %v593 = vpop.f32.mrf.mxu0
    %v594 = vadd.f32 %v562, %v593
    %v595 = vand.u32 %v130, 4294901760
    %596 = vmatmul.f32.gmra.mxu0 %v595
    %v597 = vpop.f32.mrf.mxu0
    %v598 = vadd.f32 %v566, %v597
    %599 = vdwg.mxu0
    %v600 = vtanh.pop %v356
    %v601 = vtanh.pop %v590
    %v602 = vtanh.pop %v360
    %v603 = vtanh.pop %v594
    %v604 = vtanh.pop %v364
    %v605 = vtanh.pop %v598
    %606 = vset.pattern.permute.xlu0 28
    %607 = vperm.xlu0 %606, %v27
    %v608 = vpop.permute.xlu0 %607
    %610 = vset.pattern.permute.xlu0 28
    %611 = vperm.xlu0 %610, %v28
    %v612 = vpop.permute.xlu0 %611
    %614 = vset.pattern.permute.xlu0 28
    %615 = vperm.xlu0 %614, %v29
    %v616 = vpop.permute.xlu0 %615
    %v618 = vmul.f32 %v608, %v600
    %v619 = vmul.f32 %v608, %v601
    %v620 = vmul.f32 %v612, %v602
    %v621 = vmul.f32 %v612, %v603
    %v622 = vmul.f32 %v616, %v604
    %v623 = vmul.f32 %v616, %v605
    %v624 = vadd.f32 %v618, %v620
    %v625 = vadd.f32 %v624, %v622
    %v626 = vrot.slane %v625, 4
    %v627 = vadd.f32 %v625, %v626
    %v628 = vrot.slane %v627, 2
    %v629 = vadd.f32 %v627, %v628
    %v630 = vrot.slane %v629, 1
    %v631 = vadd.f32 %v629, %v630
    %v632 = vadd.f32 %v619, %v621
    %v633 = vadd.f32 %v632, %v623
    %v634 = vrot.slane %v633, 4
    %v635 = vadd.f32 %v633, %v634
    %v636 = vrot.slane %v635, 2
    %v637 = vadd.f32 %v635, %v636
    %v638 = vrot.slane %v637, 1
    %v639 = vadd.f32 %v637, %v638
    %641 = vset.pattern.permute.xlu0 29
    %642 = vperm.xlu0 %641, %v30
    %v643 = vpop.permute.xlu0 %642
    %v645 = vadd.f32 %v631, %v643
    %v646 = vadd.f32 %v639, %v643
    %v649 = vrot.slane %v646, 7
    %vm650 = vcmask 1040384
    %v651 = vsel %vm650, %v645, %v649
    %v653 = vlaneseq
    %vm654 = vcmp.ge.s32.totalorder %v653, 0
    %vm655 = vcmp.lt.s32.totalorder %v653, 256
    %vm656 = vmand %vm654, %vm655
    %657 = vst.msk [vmem:[%s2] sm:$0x3] %vm656, %v651
    // Predicated region
    $region14: #{pinn_forward.1} parent=1 // pred_check
      _
    $region15: #{pinn_forward.1} parent=1 // pred_check_branch
      %659 = sbr.rel (0) target = $region17
    $region16: #{pinn_forward.1} parent=1 // pred_region
      _
    $region17: #{pinn_forward.1} parent=1 // pred_fallthru
      _
    // Predicated region
    $region18: #{pinn_forward.1} parent=1 // pred_check
      _
    $region19: #{pinn_forward.1} parent=1 // pred_check_branch
      %661 = sbr.rel (0) target = $region21
    $region20: #{pinn_forward.1} parent=1 // pred_region
      _
    $region21: #{pinn_forward.1} parent=1 // pred_fallthru
      _
    %662 = vsyncpa [#allocation3], 1

</llo_original>
